<compile_context>
chip_gen: v7x
topology: tpu7x:2x2x1
jax: 0.10.0
libtpu: 0.0.40
codegen_flags: <defaults>
</compile_context>

<pallas_src>
import sys
import functools

import jax
import jax.numpy as jnp
from jax.experimental import pallas as pl
from jax.experimental.pallas import tpu as pltpu

EPS = sys.float_info.epsilon   # matches the PyTorch spec's `sys.float_info.epsilon`

_LANES = 128


def _round_up(x, m):
    return ((x + m - 1) // m) * m


def _num_tensorcores():
    """2 on v7x (two TensorCores per chip), 1 on v5e/v6e; safe fallback = 1."""
    try:
        kind = jax.devices()[0].device_kind.lower()
    except Exception:
        return 1
    return 2 if ("v7" in kind or "7x" in kind) else 1


def _attn_sse_kernel(*refs, num_head, tm, m_rows, n_blocks, blocks_per_split,
                     use_centered, has_overrun, has_partial):
    """Partial sum of squared differences over all head pairs.

    refs = (head_0, ..., head_{H-1}, out_ref, acc_ref)
      head_i : (tm, 128)  VMEM tile of head i (input dtype)
      out_ref: (8, 128)   f32, this split's partial SSE broadcast into the block
      acc_ref: (tm, 128)  f32 elementwise accumulator (reduced once per split)
    """
    head_refs = refs[:num_head]
    out_ref = refs[num_head]
    acc_ref = refs[num_head + 1]

    c = pl.program_id(0)   # parallel split (TensorCore on v7x)
    k = pl.program_id(1)   # reduction axis: row-block within this split

    @pl.when(k == 0)
    def _():
        acc_ref[...] = jnp.zeros_like(acc_ref)

    blk = c * blocks_per_split + k

    def compute_and_accumulate():
        xs = [r[...].astype(jnp.float32) for r in head_refs]

        if use_centered:
            # H * sum_i (x_i - mu)^2 == sum_{i<j} (x_i - x_j)^2, centered form
            # (stable, unlike the raw sum / sum-of-squares identity).
            s = xs[0]
            for i in range(1, num_head):
                s = s + xs[i]
            mu = s * jnp.float32(1.0 / num_head)
            part = jnp.zeros((tm, _LANES), jnp.float32)
            for x in xs:
                d = x - mu
                part = part + d * d
            part = part * jnp.float32(num_head)
        else:
            # Difference-based pair loop; pure full-width VPU work.
            part = jnp.zeros((tm, _LANES), jnp.float32)
            for i in range(num_head - 1):
                for j in range(i + 1, num_head):
                    d = xs[i] - xs[j]
                    part = part + d * d

        if has_partial:
            is_partial = (blk + 1) * tm > m_rows

            @pl.when(jnp.logical_not(is_partial))
            def _():
                acc_ref[...] = acc_ref[...] + part

            @pl.when(is_partial)
            def _():
                row_ids = (jax.lax.broadcasted_iota(jnp.int32, (tm, _LANES), 0)
                           + blk * tm)
                # where-SELECT (not a multiply) so garbage rows of the partial
                # tile can never leak Inf/NaN into the accumulator.
                acc_ref[...] = acc_ref[...] + jnp.where(row_ids < m_rows, part, 0.0)
        else:
            acc_ref[...] = acc_ref[...] + part

    if has_overrun:
        # Uneven split: clamped index_map keeps the DMA in-bounds; skip the
        # compute entirely for the overrun block(s).
        pl.when(blk < n_blocks)(compute_and_accumulate)
    else:
        compute_and_accumulate()

    @pl.when(k == pl.num_programs(1) - 1)
    def _():
        # Lane-dense aligned (8,128) output block: broadcast the split's
        # partial SSE; the wrapper reads one element per split.
        out_ref[...] = jnp.broadcast_to(jnp.sum(acc_ref[...]), (8, _LANES))


def attention_loss(heads, *, tile_rows=2048, vmem_input_budget=16 * 1024 * 1024,
                   split=None):
    """heads: list/tuple of equally-shaped arrays (e.g. NCHW tensors)."""
    num_head = len(heads)
    if num_head <= 1:
        return jnp.float32(0.0)

    n = 1
    for s in heads[0].shape:
        n *= int(s)

    cnt = num_head * (num_head - 1) // 2

    flats = [jnp.reshape(h, (-1,)) for h in heads]

    m_rows = n // _LANES            # full 128-lane rows
    n_aligned = m_rows * _LANES

    # Ragged tail (n % 128 elements): tiny plain-JAX epilogue instead of
    # jnp.pad-ing every head (saves ~a full extra HBM read+write per head).
    tail_sse = jnp.float32(0.0)
    if n_aligned != n:
        tails = [f[n_aligned:].astype(jnp.float32) for f in flats]
        for i in range(num_head - 1):
            for j in range(i + 1, num_head):
                d = tails[i] - tails[j]
                tail_sse = tail_sse + jnp.sum(d * d)

    if m_rows == 0:
        total_sse = tail_sse
    else:
        # TODO(synk): when n % 128 != 0 the prefix slice below is one extra
        # copy; avoiding it entirely would need a manual-DMA (pl.ANY) path.
        if n_aligned != n:
            xs = [jnp.reshape(f[:n_aligned], (m_rows, _LANES)) for f in flats]
        else:
            xs = [jnp.reshape(f, (m_rows, _LANES)) for f in flats]

        # --- tile sizing -----------------------------------------------------
        itemsize = jnp.dtype(xs[0].dtype).itemsize
        if itemsize >= 4:
            sub = 8        # f32 native sublane tile
        elif itemsize == 2:
            sub = 16       # bf16
        else:
            sub = 32       # int8 / fp8

        per_row_bytes = 2 * num_head * _LANES * itemsize   # double-buffered inputs
        max_tm = max(sub, vmem_input_budget // per_row_bytes)
        tm = min(int(tile_rows), int(max_tm), _round_up(m_rows, sub))
        tm = max(sub, (tm // sub) * sub)

        n_blocks = (m_rows + tm - 1) // tm

        # --- split across TensorCores ---------------------------------------
        if split is None:
            split = _num_tensorcores()      # 2 on v7x, 1 on v5e/v6e
        split = max(1, min(int(split), n_blocks))
        if split > 1 and (n_blocks % split) != 0 and n_blocks < 8:
            # For short inputs an uneven split just wastes a duplicated tile
            # DMA + a second epilogue; collapse it.
            split = 1

        blocks_per_split = (n_blocks + split - 1) // split
        has_overrun = (split * blocks_per_split) != n_blocks
        has_partial = (m_rows % tm) != 0
        use_centered = (num_head >= 5) or (itemsize < 4)

        grid = (split, blocks_per_split)

        def in_index_map(c, k):
            blk = c * blocks_per_split + k
            if has_overrun:
                # Clamp so the DMA never walks past the array; the kernel skips
                # compute for those blocks.
                blk = jnp.minimum(blk, n_blocks - 1)
            return (blk, 0)

        kernel = functools.partial(
            _attn_sse_kernel,
            num_head=num_head,
            tm=tm,
            m_rows=m_rows,
            n_blocks=n_blocks,
            blocks_per_split=blocks_per_split,
            use_centered=use_centered,
            has_overrun=has_overrun,
            has_partial=has_partial,
        )

        sse_parts = pl.pallas_call(
            kernel,
            out_shape=jax.ShapeDtypeStruct((split * 8, _LANES), jnp.float32),
            grid_spec=pltpu.PrefetchScalarGridSpec(
                num_scalar_prefetch=0,
                grid=grid,
                in_specs=[
                    pl.BlockSpec((tm, _LANES), in_index_map)
                    for _ in range(num_head)
                ],
                out_specs=pl.BlockSpec((8, _LANES), lambda c, k: (c, 0)),
                scratch_shapes=[pltpu.VMEM((tm, _LANES), jnp.float32)],
            ),
            compiler_params=pltpu.CompilerParams(
                dimension_semantics=("parallel", "arbitrary"),
                vmem_limit_bytes=32 * 1024 * 1024,
            ),
        )(*xs)

        # One element per split carries that split's partial SSE.
        per_split = jnp.reshape(sse_parts, (split, 8 * _LANES))[:, 0]
        total_sse = jnp.sum(per_split) + tail_sse

    loss_sum = total_sse / jnp.float32(n)       # sum of per-pair MSEs
    return jnp.float32(cnt) / (loss_sum + jnp.float32(EPS))


def attention_loss_ref(heads):
    """Pure-JAX reference mirroring the PyTorch module."""
    num_head = len(heads)
    if num_head <= 1:
        return jnp.float32(0.0)
    loss = jnp.float32(0.0)
    cnt = 0
    for i in range(num_head - 1):
        for j in range(i + 1, num_head):
            loss = loss + jnp.mean(
                (heads[i].astype(jnp.float32) - heads[j].astype(jnp.float32)) ** 2
            )
            cnt += 1
    return cnt / (loss + jnp.float32(EPS))


if __name__ == "__main__":
    key = jax.random.PRNGKey(0)
    num_head = 4
    shape = (2, 4, 16, 16)  # NCHW per head
    keys = jax.random.split(key, num_head)
    heads = [jax.random.normal(k, shape, dtype=jnp.float32) for k in keys]

    out = attention_loss(heads)
    out = jax.block_until_ready(out)

    ref = attention_loss_ref(heads)
    assert jnp.allclose(out, ref, rtol=1e-5, atol=1e-5), (out, ref)

    print("KERNEL_OK")
</pallas_src>

<mosaic_0001>
module attributes {stable_mosaic.version = 11 : i64} {
  func.func @_attn_sse_kernel(%arg0: i32, %arg1: i32, %arg2: memref<16x128xf32, #tpu.memory_space<vmem>>, %arg3: memref<16x128xf32, #tpu.memory_space<vmem>>, %arg4: memref<16x128xf32, #tpu.memory_space<vmem>>, %arg5: memref<16x128xf32, #tpu.memory_space<vmem>>, %arg6: memref<8x128xf32, #tpu.memory_space<vmem>>, %arg7: memref<16x128xf32, #tpu.memory_space<vmem>>) attributes {dimension_semantics = [#tpu.dimension_semantics<parallel>, #tpu.dimension_semantics<arbitrary>], iteration_bounds = array<i64: 1, 1>, scalar_prefetch = 0 : i64, scratch_operands = 1 : i64, tpu.core_type = #tpu.core_type<tc>, window_params = [{transform_indices = @transform_0, window_bounds = array<i64: 16, 128>}, {transform_indices = @transform_1, window_bounds = array<i64: 16, 128>}, {transform_indices = @transform_2, window_bounds = array<i64: 16, 128>}, {transform_indices = @transform_3, window_bounds = array<i64: 16, 128>}, {transform_indices = @transform_4, window_bounds = array<i64: 8, 128>}]} {
    %c0_i32 = arith.constant 0 : i32
    %0 = arith.cmpi eq, %arg1, %c0_i32 : i32
    %1 = arith.extui %0 : i1 to i32
    %c0_i32_0 = arith.constant 0 : i32
    %2 = arith.cmpi ne, %1, %c0_i32_0 : i32
    scf.if %2 {
      %cst_14 = arith.constant 0.000000e+00 : f32
      %32 = vector.broadcast %cst_14 : f32 to vector<16x128xf32>
      %c0_15 = arith.constant 0 : index
      %c0_16 = arith.constant 0 : index
      %33 = vector.load %arg7[%c0_15, %c0_16] : memref<16x128xf32, #tpu.memory_space<vmem>>, vector<16x128xf32>
      tpu.vector_store %arg7[%c0_15, %c0_16], %32 {strides = array<i32>} : memref<16x128xf32, #tpu.memory_space<vmem>>, vector<16x128xf32>,
    } else {
    }
    %c0 = arith.constant 0 : index
    %c0_1 = arith.constant 0 : index
    %3 = vector.load %arg2[%c0, %c0_1] : memref<16x128xf32, #tpu.memory_space<vmem>>, vector<16x128xf32>
    %c0_2 = arith.constant 0 : index
    %c0_3 = arith.constant 0 : index
    %4 = vector.load %arg3[%c0_2, %c0_3] : memref<16x128xf32, #tpu.memory_space<vmem>>, vector<16x128xf32>
    %c0_4 = arith.constant 0 : index
    %c0_5 = arith.constant 0 : index
    %5 = vector.load %arg4[%c0_4, %c0_5] : memref<16x128xf32, #tpu.memory_space<vmem>>, vector<16x128xf32>
    %c0_6 = arith.constant 0 : index
    %c0_7 = arith.constant 0 : index
    %6 = vector.load %arg5[%c0_6, %c0_7] : memref<16x128xf32, #tpu.memory_space<vmem>>, vector<16x128xf32>
    %cst = arith.constant 0.000000e+00 : f32
    %7 = vector.broadcast %cst : f32 to vector<16x128xf32>
    %8 = arith.subf %3, %4 : vector<16x128xf32>
    %9 = arith.mulf %8, %8 : vector<16x128xf32>
    %10 = arith.addf %7, %9 : vector<16x128xf32>
    %11 = arith.subf %3, %5 : vector<16x128xf32>
    %12 = arith.mulf %11, %11 : vector<16x128xf32>
    %13 = arith.addf %10, %12 : vector<16x128xf32>
    %14 = arith.subf %3, %6 : vector<16x128xf32>
    %15 = arith.mulf %14, %14 : vector<16x128xf32>
    %16 = arith.addf %13, %15 : vector<16x128xf32>
    %17 = arith.subf %4, %5 : vector<16x128xf32>
    %18 = arith.mulf %17, %17 : vector<16x128xf32>
    %19 = arith.addf %16, %18 : vector<16x128xf32>
    %20 = arith.subf %4, %6 : vector<16x128xf32>
    %21 = arith.mulf %20, %20 : vector<16x128xf32>
    %22 = arith.addf %19, %21 : vector<16x128xf32>
    %23 = arith.subf %5, %6 : vector<16x128xf32>
    %24 = arith.mulf %23, %23 : vector<16x128xf32>
    %25 = arith.addf %22, %24 : vector<16x128xf32>
    %c0_8 = arith.constant 0 : index
    %c0_9 = arith.constant 0 : index
    %26 = vector.load %arg7[%c0_8, %c0_9] : memref<16x128xf32, #tpu.memory_space<vmem>>, vector<16x128xf32>
    %27 = arith.addf %26, %25 : vector<16x128xf32>
    %c0_10 = arith.constant 0 : index
    %c0_11 = arith.constant 0 : index
    %28 = vector.load %arg7[%c0_10, %c0_11] : memref<16x128xf32, #tpu.memory_space<vmem>>, vector<16x128xf32>
    tpu.vector_store %arg7[%c0_10, %c0_11], %27 {strides = array<i32>} : memref<16x128xf32, #tpu.memory_space<vmem>>, vector<16x128xf32>,
    %c0_i32_12 = arith.constant 0 : i32
    %29 = arith.cmpi eq, %arg1, %c0_i32_12 : i32
    %30 = arith.extui %29 : i1 to i32
    %c0_i32_13 = arith.constant 0 : i32
    %31 = arith.cmpi ne, %30, %c0_i32_13 : i32
    scf.if %31 {
      %c0_14 = arith.constant 0 : index
      %c0_15 = arith.constant 0 : index
      %32 = vector.load %arg7[%c0_14, %c0_15] : memref<16x128xf32, #tpu.memory_space<vmem>>, vector<16x128xf32>
      %33 = vector.shape_cast %32 : vector<16x128xf32> to vector<1x16x128xf32>
      %cst_16 = arith.constant dense<0.000000e+00> : vector<1xf32>
      %34 = vector.multi_reduction <add>, %33, %cst_16 [1, 2] : vector<1x16x128xf32> to vector<1xf32>
      %35 = vector.shape_cast %34 : vector<1xf32> to vector<1x1x1xf32>
      %36 = vector.extract %35[0, 0, 0] : f32 from vector<1x1x1xf32>
      %37 = vector.broadcast %36 : f32 to vector<8x128xf32>
      %c0_17 = arith.constant 0 : index
      %c0_18 = arith.constant 0 : index
      %38 = vector.load %arg6[%c0_17, %c0_18] : memref<8x128xf32, #tpu.memory_space<vmem>>, vector<8x128xf32>
      tpu.vector_store %arg6[%c0_17, %c0_18], %37 {strides = array<i32>} : memref<8x128xf32, #tpu.memory_space<vmem>>, vector<8x128xf32>,
    } else {
    }
    return
  }
  func.func @transform_0(%arg0: i32, %arg1: i32) -> (i32, i32) {
    %c1_i32 = arith.constant 1 : i32
    %0 = arith.muli %arg0, %c1_i32 : i32
    %1 = arith.addi %0, %arg1 : i32
    %c0_i32 = arith.constant 0 : i32
    %c0_i32_0 = arith.constant 0 : i32
    return %1, %c0_i32 : i32, i32
  }
  func.func @transform_1(%arg0: i32, %arg1: i32) -> (i32, i32) {
    %c1_i32 = arith.constant 1 : i32
    %0 = arith.muli %arg0, %c1_i32 : i32
    %1 = arith.addi %0, %arg1 : i32
    %c0_i32 = arith.constant 0 : i32
    %c0_i32_0 = arith.constant 0 : i32
    return %1, %c0_i32 : i32, i32
  }
  func.func @transform_2(%arg0: i32, %arg1: i32) -> (i32, i32) {
    %c1_i32 = arith.constant 1 : i32
    %0 = arith.muli %arg0, %c1_i32 : i32
    %1 = arith.addi %0, %arg1 : i32
    %c0_i32 = arith.constant 0 : i32
    %c0_i32_0 = arith.constant 0 : i32
    return %1, %c0_i32 : i32, i32
  }
  func.func @transform_3(%arg0: i32, %arg1: i32) -> (i32, i32) {
    %c1_i32 = arith.constant 1 : i32
    %0 = arith.muli %arg0, %c1_i32 : i32
    %1 = arith.addi %0, %arg1 : i32
    %c0_i32 = arith.constant 0 : i32
    %c0_i32_0 = arith.constant 0 : i32
    return %1, %c0_i32 : i32, i32
  }
  func.func @transform_4(%arg0: i32, %arg1: i32) -> (i32, i32) {
    %c0_i32 = arith.constant 0 : i32
    %c0_i32_0 = arith.constant 0 : i32
    return %arg0, %c0_i32 : i32, i32
  }
}

</mosaic_0001>

<llo_original>
// kernel: tpu_custom_call.1
$region0: #{tpu_custom_call.1}
  #allocation0 [shape = 'u32[]', space=smem, size = 0x4, offset = 0x4, fixed_abs, tag = 'smem constant byte address 0x4 - core index']
  #allocation1 [shape = 'u32[144,128]{1,0:T(1,128)}', space=vmem, size = 0x12000, scoped, tag = 'internal scratch']
  #allocation2 [shape = 'f32[16,128]{1,0:T(8,128)}', space=vmem, size = 0x2000, scoped, tag = 'scratch operand']
  %s0 = inlined_call_operand.hbm [shape: f32[16,128], index: 0, kind: input, shape index: {}]
  %s1 = inlined_call_operand.hbm [shape: f32[16,128], index: 1, kind: input, shape index: {}]
  %s2 = inlined_call_operand.hbm [shape: f32[16,128], index: 2, kind: input, shape index: {}]
  %s3 = inlined_call_operand.hbm [shape: f32[16,128], index: 3, kind: input, shape index: {}]
  %s4 = inlined_call_operand.hbm [shape: f32[8,128], index: 4, kind: output, shape index: {}]
  %s5 = sld [smem:[#allocation0]]
  $region50: #{tpu_custom_call.1} parent=0
    _
  %s7 = ssub.s32 1, %s5
  %s8 = scalar_select 0, %s7, %s5
  $region1: #{tpu_custom_call.1} parent=0
    #allocation3 [shape = 'u8[8192]{0}', space=vmem, size = 0x2000, scoped, tag = 'input window, operand 0, single buffered']
    #allocation4 [shape = 's32[1]{0}', space=sflag, size = 0x4, scoped, tag = 'scoped memory for tpu_custom_call.1']
    #allocation5 [shape = 's32[1]{0}', space=sflag, size = 0x4, scoped, tag = 'scoped memory for tpu_custom_call.1']
    #allocation6 [shape = 'u8[8192]{0}', space=vmem, size = 0x2000, scoped, tag = 'input window, operand 1, single buffered']
    #allocation7 [shape = 's32[1]{0}', space=sflag, size = 0x4, scoped, tag = 'scoped memory for tpu_custom_call.1']
    #allocation8 [shape = 'u8[8192]{0}', space=vmem, size = 0x2000, scoped, tag = 'input window, operand 2, single buffered']
    #allocation9 [shape = 'u8[8192]{0}', space=vmem, size = 0x2000, scoped, tag = 'input window, operand 3, single buffered']
    #allocation10 [shape = 's32[1]{0}', space=sflag, size = 0x4, scoped, tag = 'scoped memory for tpu_custom_call.1']
    #allocation11 [shape = 'u8[4096]{0}', space=vmem, size = 0x1000, scoped, tag = 'output window, operand 0, single buffered']
    %9 = vsyncpa [#allocation4], 0
    %10 = vsyncpa [#allocation7], 0
    %11 = vsyncpa [#allocation10], 0
    %12 = vsyncpa [#allocation5], 0
    // Predicated region
    $region2: #{tpu_custom_call.1} parent=1 // pred_check
      _
    $region3: #{tpu_custom_call.1} parent=1 // pred_check_branch
      %14 = sbr.rel (0) target = $region5
    $region4: #{tpu_custom_call.1} parent=1 // pred_region
      %s15 = sadd.s32 0, 0
      %s16 = smul.u32 2, %s15
      %s18 = ssub.s32 256, 256
      %19 = vsyncadd [#allocation4], %s18
      %s20 = smul.addr %s16, 128
      %s21 = scalar_lea.hbm %s0, %s20
      %s22 = sshll.u32 [#allocation3], 4
      %s23 = int_to_ptr.vmem [resolvable:$true] %s22
      %28 = dma.hbm_to_vmem [thread:$0]  %s21, 256, %s23, [#allocation4], 128, 128, 8
    $region5: #{tpu_custom_call.1} parent=1 // pred_fallthru
      _
    // Predicated region
    $region6: #{tpu_custom_call.1} parent=1 // pred_check
      _
    $region7: #{tpu_custom_call.1} parent=1 // pred_check_branch
      %30 = sbr.rel (0) target = $region9
    $region8: #{tpu_custom_call.1} parent=1 // pred_region
      %s31 = sadd.s32 0, 0
      %s32 = smul.u32 2, %s31
      %s34 = ssub.s32 256, 256
      %35 = vsyncadd [#allocation7], %s34
      %s36 = smul.addr %s32, 128
      %s37 = scalar_lea.hbm %s1, %s36
      %s38 = sshll.u32 [#allocation6], 4
      %s39 = int_to_ptr.vmem [resolvable:$true] %s38
      %44 = dma.hbm_to_vmem [thread:$0]  %s37, 256, %s39, [#allocation7], 128, 128, 8
    $region9: #{tpu_custom_call.1} parent=1 // pred_fallthru
      _
    // Predicated region
    $region10: #{tpu_custom_call.1} parent=1 // pred_check
      _
    $region11: #{tpu_custom_call.1} parent=1 // pred_check_branch
      %46 = sbr.rel (0) target = $region13
    $region12: #{tpu_custom_call.1} parent=1 // pred_region
      %s47 = sadd.s32 0, 0
      %s48 = smul.u32 2, %s47
      %s50 = ssub.s32 256, 256
      %51 = vsyncadd [#allocation7], %s50
      %s52 = smul.addr %s48, 128
      %s53 = scalar_lea.hbm %s2, %s52
      %s54 = sshll.u32 [#allocation8], 4
      %s55 = int_to_ptr.vmem [resolvable:$true] %s54
      %60 = dma.hbm_to_vmem [thread:$0]  %s53, 256, %s55, [#allocation7], 128, 128, 8
    $region13: #{tpu_custom_call.1} parent=1 // pred_fallthru
      _
    // Predicated region
    $region14: #{tpu_custom_call.1} parent=1 // pred_check
      _
    $region15: #{tpu_custom_call.1} parent=1 // pred_check_branch
      %62 = sbr.rel (0) target = $region17
    $region16: #{tpu_custom_call.1} parent=1 // pred_region
      %s63 = sadd.s32 0, 0
      %s64 = smul.u32 2, %s63
      %s66 = ssub.s32 256, 256
      %67 = vsyncadd [#allocation10], %s66
      %s68 = smul.addr %s64, 128
      %s69 = scalar_lea.hbm %s3, %s68
      %s70 = sshll.u32 [#allocation9], 4
      %s71 = int_to_ptr.vmem [resolvable:$true] %s70
      %76 = dma.hbm_to_vmem [thread:$0]  %s69, 256, %s71, [#allocation10], 128, 128, 8
    $region17: #{tpu_custom_call.1} parent=1 // pred_fallthru
      _
    // Predicated region
    $region18: #{tpu_custom_call.1} parent=1 // pred_check
      _
    $region19: #{tpu_custom_call.1} parent=1 // pred_check_branch
      %78 = sbr.rel (0) target = $region21
    $region20: #{tpu_custom_call.1} parent=1 // pred_region
      %79 = dma.done [#allocation4], 256
    $region21: #{tpu_custom_call.1} parent=1 // pred_fallthru
      _
    // Predicated region
    $region22: #{tpu_custom_call.1} parent=1 // pred_check
      _
    $region23: #{tpu_custom_call.1} parent=1 // pred_check_branch
      %81 = sbr.rel (0) target = $region25
    $region24: #{tpu_custom_call.1} parent=1 // pred_region
      %82 = dma.done [#allocation7], 256
    $region25: #{tpu_custom_call.1} parent=1 // pred_fallthru
      _
    // Predicated region
    $region26: #{tpu_custom_call.1} parent=1 // pred_check
      _
    $region27: #{tpu_custom_call.1} parent=1 // pred_check_branch
      %84 = sbr.rel (0) target = $region29
    $region28: #{tpu_custom_call.1} parent=1 // pred_region
      %85 = dma.done [#allocation7], 256
    $region29: #{tpu_custom_call.1} parent=1 // pred_fallthru
      _
    // Predicated region
    $region30: #{tpu_custom_call.1} parent=1 // pred_check
      _
    $region31: #{tpu_custom_call.1} parent=1 // pred_check_branch
      %87 = sbr.rel (0) target = $region33
    $region32: #{tpu_custom_call.1} parent=1 // pred_region
      %88 = dma.done [#allocation10], 256
    $region33: #{tpu_custom_call.1} parent=1 // pred_fallthru
      _
    %s89 = sadd.s32 0, 0
    %s90 = smul.u32 2, %s89
    %s91 = sadd.s32 0, 0
    %s92 = smul.u32 2, %s91
    %s93 = sadd.s32 0, 0
    %s94 = smul.u32 2, %s93
    %s95 = sadd.s32 0, 0
    %s96 = smul.u32 2, %s95
    %p97 = scmp.eq.s32.totalorder 0, 0
    // Predicated region
    $region34: #{tpu_custom_call.1} parent=1 // pred_check
      %p98 = pneg %p97
    $region35: #{tpu_custom_call.1} parent=1 // pred_check_branch
      %100 = sbr.rel (%p98) target = $region37
    $region36: #{tpu_custom_call.1} parent=1 // pred_region
      %101 = vst [vmem:[#allocation2] sm:$0xff] 0.0
      %102 = vst [vmem:[#allocation2 + $0x8] sm:$0xff] 0.0
    $region37: #{tpu_custom_call.1} parent=1 // pred_fallthru
      _
    %v103 = vld [vmem:[#allocation3] sm:$0xff]
    %v104 = vld [vmem:[#allocation3 + $0x8] sm:$0xff]
    %v105 = vld [vmem:[#allocation6] sm:$0xff]
    %v106 = vld [vmem:[#allocation6 + $0x8] sm:$0xff]
    %v107 = vld [vmem:[#allocation8] sm:$0xff]
    %v108 = vld [vmem:[#allocation8 + $0x8] sm:$0xff]
    %v109 = vld [vmem:[#allocation9] sm:$0xff]
    %v110 = vld [vmem:[#allocation9 + $0x8] sm:$0xff]
    %v111 = vsub.f32 %v103, %v105
    %v112 = vsub.f32 %v104, %v106
    %v113 = vmul.f32 %v111, %v111
    %v114 = vmul.f32 %v112, %v112
    %v115 = vadd.f32 %v113, 0.0
    %v116 = vadd.f32 %v114, 0.0
    %v117 = vsub.f32 %v103, %v107
    %v118 = vsub.f32 %v104, %v108
    %v119 = vmul.f32 %v117, %v117
    %v120 = vmul.f32 %v118, %v118
    %v121 = vadd.f32 %v115, %v119
    %v122 = vadd.f32 %v116, %v120
    %v123 = vsub.f32 %v103, %v109
    %v124 = vsub.f32 %v104, %v110
    %v125 = vmul.f32 %v123, %v123
    %v126 = vmul.f32 %v124, %v124
    %v127 = vadd.f32 %v121, %v125
    %v128 = vadd.f32 %v122, %v126
    %v129 = vsub.f32 %v105, %v107
    %v130 = vsub.f32 %v106, %v108
    %v131 = vmul.f32 %v129, %v129
    %v132 = vmul.f32 %v130, %v130
    %v133 = vadd.f32 %v127, %v131
    %v134 = vadd.f32 %v128, %v132
    %v135 = vsub.f32 %v105, %v109
    %v136 = vsub.f32 %v106, %v110
    %v137 = vmul.f32 %v135, %v135
    %v138 = vmul.f32 %v136, %v136
    %v139 = vadd.f32 %v133, %v137
    %v140 = vadd.f32 %v134, %v138
    %v141 = vsub.f32 %v107, %v109
    %v142 = vsub.f32 %v108, %v110
    %v143 = vmul.f32 %v141, %v141
    %v144 = vmul.f32 %v142, %v142
    %v145 = vadd.f32 %v139, %v143
    %v146 = vadd.f32 %v140, %v144
    %v147 = vld [vmem:[#allocation2] sm:$0xff]
    %v148 = vld [vmem:[#allocation2 + $0x8] sm:$0xff]
    %v149 = vadd.f32 %v147, %v145
    %v150 = vadd.f32 %v148, %v146
    %151 = vst [vmem:[#allocation2] sm:$0xff] %v149
    %152 = vst [vmem:[#allocation2 + $0x8] sm:$0xff] %v150
    // Predicated region
    $region38: #{tpu_custom_call.1} parent=1 // pred_check
      %p153 = pneg %p97
    $region39: #{tpu_custom_call.1} parent=1 // pred_check_branch
      %155 = sbr.rel (%p153) target = $region41
    $region40: #{tpu_custom_call.1} parent=1 // pred_region
      %v156 = vld [vmem:[#allocation2] sm:$0xff]
      %v157 = vld [vmem:[#allocation2 + $0x8] sm:$0xff]
      %v158 = vadd.f32 %v156, %v157
      %159 = vadd.xlane.f32.xlu0 %v158
      %v160 = vpop.xlane.xlu0 %159
      %v161 = vrot.slane %v160, 4
      %v162 = vadd.f32 %v160, %v161
      %v163 = vrot.slane %v162, 2
      %v164 = vadd.f32 %v162, %v163
      %v165 = vrot.slane %v164, 1
      %v166 = vadd.f32 %v164, %v165
      %s167 = vtos %v166
      %v168 = vstv %s167
      %169 = vst [vmem:[#allocation11] sm:$0xff] %v168
    $region41: #{tpu_custom_call.1} parent=1 // pred_fallthru
      _
    // Predicated region
    $region42: #{tpu_custom_call.1} parent=1 // pred_check
      _
    $region43: #{tpu_custom_call.1} parent=1 // pred_check_branch
      %171 = sbr.rel (0) target = $region45
    $region44: #{tpu_custom_call.1} parent=1 // pred_region
      %s173 = ssub.s32 128, 128
      %174 = vsyncadd [#allocation5], %s173
      %s176 = sshll.u32 [#allocation11], 4
      %s177 = int_to_ptr.vmem [resolvable:$true] %s176
      %179 = dma.vmem_to_hbm [thread:$0]  %s177, 128, %s4, [#allocation5]
    $region45: #{tpu_custom_call.1} parent=1 // pred_fallthru
      _
    // Predicated region
    $region46: #{tpu_custom_call.1} parent=1 // pred_check
      _
    $region47: #{tpu_custom_call.1} parent=1 // pred_check_branch
      %181 = sbr.rel (0) target = $region49
    $region48: #{tpu_custom_call.1} parent=1 // pred_region
      %182 = dma.done [#allocation5], 128
    $region49: #{tpu_custom_call.1} parent=1 // pred_fallthru
      _
    %183 = vsyncpa [#allocation4], 1
    %184 = vsyncpa [#allocation7], 1
    %185 = vsyncpa [#allocation10], 1
    %186 = vsyncpa [#allocation5], 1

</llo_original>
